<compile_context>
chip_gen: v7x
topology: tpu7x:2x2x1
jax: 0.10.0
libtpu: 0.0.40
codegen_flags: <defaults>
</compile_context>

<pallas_src>
import math

import jax
import jax.numpy as jnp
from jax.experimental import pallas as pl
from jax.experimental.pallas import tpu as pltpu


def _softplus(x):
    # numerically stable softplus using only VPU/EUP-friendly ops
    return jnp.maximum(x, 0.0) + jnp.log(1.0 + jnp.exp(-jnp.abs(x)))


# ----------------------------------------------------------------------------------
# Kernel 1 (fused): SIVI MLP -> reparameterized sample -> KL(prior || q_w)
#   h     = tanh(noise @ W1 + b1)
#   mu_w  = h @ W2_w + b2_w        (weight-mean columns)
#   mu_b  = h @ W2_b + b2_b        (bias-mean columns)
#   w     = mu_w + softplus(w_logsigma) * eps_w
#   b     = mu_b + softplus(b_logsigma) * eps_b
#   kl    = KL( N(0, prior_sigma) || N(mu_w, w_std) ).mean(dim=0).sum()
# ----------------------------------------------------------------------------------
def _make_sivi_fused_kernel(prior_sigma, kl_denom):
    def kernel(logsig_ref, noise_ref, w1_ref, b1_ref, w2w_ref, b2w_ref,
               w2b_ref, b2b_ref, epsw_ref, epsb_ref,
               w_ref, b_ref, kl_ref):
        h = jnp.tanh(
            jnp.dot(noise_ref[...], w1_ref[...], preferred_element_type=jnp.float32)
            + b1_ref[...]
        )
        mu_w = (
            jnp.dot(h, w2w_ref[...], preferred_element_type=jnp.float32) + b2w_ref[...]
        )                                            # (num_MC, n_w)
        mu_b = (
            jnp.dot(h, w2b_ref[...], preferred_element_type=jnp.float32) + b2b_ref[...]
        )                                            # (num_MC, C_out)

        # log-sigmas arrive as two SMEM scalars; broadcast before the transcendental
        # so softplus runs on the VPU/EUP.
        w_std = _softplus(jnp.full((1, 1), logsig_ref[0], jnp.float32))
        b_std = _softplus(jnp.full((1, 1), logsig_ref[1], jnp.float32))

        # reparameterized samples of conv weights and biases
        w_ref[...] = mu_w + w_std * epsw_ref[...]
        b_ref[...] = mu_b + b_std * epsb_ref[...]

        # KL( N(0, prior_sigma) || N(mu_w, w_std) ), .mean(dim=0).sum() over
        # w_mu viewed as [num_MC*C_out, C_in*k*k]  ->  sum / (num_MC*C_out)
        ps = prior_sigma
        kl_elem = (
            jnp.log(w_std / ps) + (ps * ps + mu_w * mu_w) / (2.0 * w_std * w_std) - 0.5
        )
        kl_ref[...] = jnp.sum(kl_elem, axis=(0, 1), keepdims=True) / kl_denom

    return kernel


def sivi_sample_and_kl(logsig, noise, w1, b1, w2w, b2w, w2b, b2b, eps_w, eps_b,
                       prior_sigma, kl_denom):
    num_mc = noise.shape[0]
    n_w = w2w.shape[1]
    c_out = w2b.shape[1]
    vmem = pl.BlockSpec(memory_space=pltpu.MemorySpace.VMEM)
    smem = pl.BlockSpec(memory_space=pltpu.MemorySpace.SMEM)
    # TODO(synk): for dim_params >~ a few thousand, add a grid over 128-wide column
    # tiles of W2/b2/eps/outputs (h stays resident) and set vmem_limit_bytes per
    # generation (v7x has 64 MiB physical VMEM, half of v5e/v6e).
    # TODO(synk): add a custom_vjp if this layer is trained (pallas_call has no autodiff).
    w_flat, b, kl = pl.pallas_call(
        _make_sivi_fused_kernel(float(prior_sigma), float(kl_denom)),
        out_shape=(
            jax.ShapeDtypeStruct((num_mc, n_w), jnp.float32),
            jax.ShapeDtypeStruct((num_mc, c_out), jnp.float32),
            jax.ShapeDtypeStruct((1, 1), jnp.float32),
        ),
        in_specs=[smem] + [vmem] * 9,
        out_specs=(vmem, vmem, vmem),
    )(logsig, noise, w1, b1, w2w, b2w, w2b, b2b, eps_w, eps_b)
    return w_flat, b, kl[0, 0]


# ----------------------------------------------------------------------------------
# Kernel 2: grouped 1x1 conv (groups = num_MC) over the native layout.
#   out[m, b] = w[m] @ x[m, b] + bias[m],  x[m, b]: (C_in, H*W), w[m]: (C_out, C_in)
# Output emitted in bf16 (f32 accumulation); inputs stay f32 (no extra HBM cast pass).
# ----------------------------------------------------------------------------------
def _grouped_conv1x1_kernel(x_ref, w_ref, b_ref, o_ref):
    # x_ref: (C_in, HW) f32, w_ref: (C_out, C_in) f32, b_ref: (C_out, 1) f32
    acc = (
        jnp.dot(w_ref[...], x_ref[...], preferred_element_type=jnp.float32)
        + b_ref[...]
    )
    o_ref[...] = acc.astype(o_ref.dtype)


def grouped_conv1x1(x, w, b):
    # x: [num_MC, B, C_in, H*W] f32 (native layout, no wrapper transpose/copy)
    # w: [num_MC, C_out, C_in] f32; b: [num_MC, C_out, 1] f32
    num_mc, batch, c_in, hw = x.shape
    c_out = w.shape[1]
    # TODO(synk): for large H*W, add an inner "arbitrary" grid axis tiling the lane
    # dim in multiples of 512 and budget double-buffered (x tile + out tile) against
    # per-generation VMEM (v7x: 64 MiB physical / 32 MiB scoped default; v5e/v6e:
    # 128 MiB), setting pltpu.CompilerParams(vmem_limit_bytes=...) accordingly.
    # At these shapes each block is a few KiB so the defaults are fine.
    return pl.pallas_call(
        _grouped_conv1x1_kernel,
        out_shape=jax.ShapeDtypeStruct((num_mc, batch, c_out, hw), jnp.bfloat16),
        grid=(num_mc, batch),   # B innermost: w/b block indices constant -> re-DMA elided
        in_specs=[
            pl.BlockSpec((None, None, c_in, hw), lambda m, b: (m, b, 0, 0)),
            pl.BlockSpec((None, c_out, c_in), lambda m, b: (m, 0, 0)),
            pl.BlockSpec((None, c_out, 1), lambda m, b: (m, 0, 0)),
        ],
        out_specs=pl.BlockSpec((None, None, c_out, hw), lambda m, b: (m, b, 0, 0)),
        compiler_params=pltpu.CompilerParams(
            # both axes parallel so v7x's 2 TensorCores are used even when num_MC==1
            dimension_semantics=("parallel", "parallel"),
        ),
    )(x, w, b)


# ----------------------------------------------------------------------------------
# Module-equivalent wrapper
# ----------------------------------------------------------------------------------
class JointSIVICNNLayer:
    def __init__(
        self,
        dim_in,
        dim_out,
        dim_noise_input=10,
        dim_noise_hidden_layers=0,
        kernel_size=1,
        stride=1,
        prior_sigma=1.0,
        single_logstd=True,
        key=jax.random.PRNGKey(0),
    ):
        assert kernel_size == 1, "Pallas kernel implements kernel_size=1 (pointwise conv)"
        # TODO(synk): kernel_size > 1 (im2col path), single_logstd=False branch and
        # extra SIVI hidden layers are not implemented in the Pallas path.
        assert single_logstd
        assert dim_noise_hidden_layers == 0

        self.dim_in = dim_in
        self.dim_out = dim_out
        self.dim_noise_in = dim_noise_input
        self.kernel_size = kernel_size
        self.stride = stride
        self.single_logstd = single_logstd
        self.dim_params = dim_in * dim_out * kernel_size * kernel_size + dim_out
        self.n_w = dim_in * dim_out * kernel_size * kernel_size
        self.num_hidden = int(
            min(self.dim_params, (dim_noise_input + self.dim_params) // 2)
        )
        # PyTorch code overwrites prior_sigma with 1.0 unconditionally.
        self.prior_sigma = 1.0

        # Deterministic parameter init (matches PyTorch Linear default U(-1/sqrt(fan_in), +)).
        k1, k2, k3, k4 = jax.random.split(key, 4)
        b1_bound = 1.0 / math.sqrt(dim_noise_input)
        b2_bound = 1.0 / math.sqrt(self.num_hidden)
        self.W1 = jax.random.uniform(
            k1, (dim_noise_input, self.num_hidden), jnp.float32, -b1_bound, b1_bound
        )
        self.b1 = jax.random.uniform(
            k2, (1, self.num_hidden), jnp.float32, -b1_bound, b1_bound
        )
        W2 = jax.random.uniform(
            k3, (self.num_hidden, self.dim_params), jnp.float32, -b2_bound, b2_bound
        )
        b2 = jax.random.uniform(
            k4, (1, self.dim_params), jnp.float32, -b2_bound, b2_bound
        )
        # Split once at init so kernel 1 can emit w/b as separate outputs.
        self.W2_w = W2[:, : self.n_w]
        self.W2_b = W2[:, self.n_w:]
        self.b2_w = b2[:, : self.n_w]
        self.b2_b = b2[:, self.n_w:]
        self.w_logsigma = jnp.asarray(-3.0, jnp.float32)
        self.b_logsigma = jnp.asarray(-3.0, jnp.float32)

    def forward(self, x, prior, base_noise, sample_key):
        assert x.ndim == 5, "Input tensor not of shape [Num_MC, BatchSize, Features, H, W]"
        assert base_noise.shape[0] == x.shape[0], "Base noise num_MC mismatch"
        assert base_noise.shape[1] == self.dim_noise_in, "Base noise dim mismatch"

        num_mc, batch_size, c_in, H, W = x.shape
        c_out = self.dim_out

        # ---- fused SIVI hyper-net + reparameterized sample + KL (one Pallas call) ----
        kw, kb = jax.random.split(sample_key)
        eps_w = jax.random.normal(kw, (num_mc, self.n_w), jnp.float32)
        eps_b = jax.random.normal(kb, (num_mc, c_out), jnp.float32)
        logsig = jnp.stack([self.w_logsigma, self.b_logsigma]).astype(jnp.float32)

        w_flat, b_flat, kl = sivi_sample_and_kl(
            logsig, base_noise.astype(jnp.float32), self.W1, self.b1,
            self.W2_w, self.b2_w, self.W2_b, self.b2_b, eps_w, eps_b,
            prior_sigma=self.prior_sigma, kl_denom=num_mc * c_out,
        )
        # row-major reshape matches torch .view(num_MC*dim_out, dim_in, k, k)
        w = w_flat.reshape(num_mc, c_out, c_in)
        b = b_flat.reshape(num_mc, c_out, 1)

        # ---- grouped 1x1 conv in the native layout: one matmul per (MC, batch) block ----
        if self.stride > 1:
            # TODO(synk): fold the ::stride subsample into the conv BlockSpec/index_map
            # (strided pl.ds rows) to avoid this extra HBM pass when stride > 1.
            x = x[..., :: self.stride, :: self.stride]
        Hs, Ws = x.shape[-2], x.shape[-1]
        # free reshape (contiguous, no copy): [MC, B, C_in, H, W] -> [MC, B, C_in, H*W]
        x_lane = jnp.asarray(x, jnp.float32).reshape(
            num_mc, batch_size, c_in, Hs * Ws
        )
        out_lane = grouped_conv1x1(x_lane, w, b)
        # bf16 output (downstream assumed bf16-tolerant per perf guidance)
        out = out_lane.reshape(num_mc, batch_size, c_out, Hs, Ws)

        prior_out = jnp.asarray(prior, jnp.float32) + kl
        return out, None, prior_out


# ----------------------------------------------------------------------------------
# Pure-JAX reference (same math, same eps) for a correctness check
# ----------------------------------------------------------------------------------
def _reference_forward(layer, x, prior, base_noise, sample_key):
    num_mc, bsz, c_in, H, W = x.shape
    c_out = layer.dim_out
    h = jnp.tanh(base_noise @ layer.W1 + layer.b1)
    mu_w = h @ layer.W2_w + layer.b2_w
    mu_b = h @ layer.W2_b + layer.b2_b
    w_std = jax.nn.softplus(layer.w_logsigma)
    b_std = jax.nn.softplus(layer.b_logsigma)
    kw, kb = jax.random.split(sample_key)
    eps_w = jax.random.normal(kw, (num_mc, layer.n_w), jnp.float32)
    eps_b = jax.random.normal(kb, (num_mc, c_out), jnp.float32)
    w = (mu_w + w_std * eps_w).reshape(num_mc, c_out, c_in)
    b = mu_b + b_std * eps_b
    xs = x[..., :: layer.stride, :: layer.stride]
    out = jnp.einsum("moc,mbchw->mbohw", w, xs) + b[:, None, :, None, None]
    ps = 1.0
    kl = jnp.log(w_std / ps) + (ps * ps + mu_w * mu_w) / (2.0 * w_std * w_std) - 0.5
    prior_out = jnp.asarray(prior, jnp.float32) + kl.sum() / (num_mc * c_out)
    return out, prior_out


if __name__ == "__main__":
    key = jax.random.PRNGKey(0)
    k_x, k_noise, k_init, k_sample = jax.random.split(key, 4)

    num_MC, B, C_in, C_out, H, W = 2, 2, 4, 8, 16, 16
    noise_dim = 10

    x = jax.random.normal(k_x, (num_MC, B, C_in, H, W), jnp.float32)
    base_noise = jax.random.normal(k_noise, (num_MC, noise_dim), jnp.float32)
    prior_in = jnp.asarray(0.0, jnp.float32)

    layer = JointSIVICNNLayer(
        dim_in=C_in,
        dim_out=C_out,
        dim_noise_input=noise_dim,
        dim_noise_hidden_layers=0,
        kernel_size=1,
        stride=1,
        prior_sigma=1.0,
        single_logstd=True,
        key=k_init,
    )

    out, _, prior_out = layer.forward(x, prior_in, base_noise, k_sample)
    jax.block_until_ready((out, prior_out))

    assert out.shape == (num_MC, B, C_out, H, W)
    assert out.dtype == jnp.bfloat16
    assert prior_out.shape == ()

    # numeric check vs pure-JAX reference (only rounding source is the bf16 output cast)
    out_ref, prior_ref = _reference_forward(layer, x, prior_in, base_noise, k_sample)
    assert jnp.allclose(out.astype(jnp.float32), out_ref, atol=5e-2, rtol=5e-2), \
        "conv output mismatch"
    assert jnp.allclose(prior_out, prior_ref, atol=1e-3, rtol=1e-3), "KL mismatch"

    print("KERNEL_OK")
</pallas_src>

<mosaic_0001>
module attributes {stable_mosaic.version = 11 : i64} {
  func.func @kernel(%arg0: memref<2xf32, #tpu.memory_space<smem>>, %arg1: memref<2x10xf32, #tpu.memory_space<vmem>>, %arg2: memref<10x25xf32, #tpu.memory_space<vmem>>, %arg3: memref<1x25xf32, #tpu.memory_space<vmem>>, %arg4: memref<25x32xf32, #tpu.memory_space<vmem>>, %arg5: memref<1x32xf32, #tpu.memory_space<vmem>>, %arg6: memref<25x8xf32, #tpu.memory_space<vmem>>, %arg7: memref<1x8xf32, #tpu.memory_space<vmem>>, %arg8: memref<2x32xf32, #tpu.memory_space<vmem>>, %arg9: memref<2x8xf32, #tpu.memory_space<vmem>>, %arg10: memref<2x32xf32, #tpu.memory_space<vmem>>, %arg11: memref<2x8xf32, #tpu.memory_space<vmem>>, %arg12: memref<1x1xf32, #tpu.memory_space<vmem>>) attributes {dimension_semantics = [], scalar_prefetch = 0 : i64, scratch_operands = 0 : i64, tpu.core_type = #tpu.core_type<tc>} {
    %c0 = arith.constant 0 : index
    %c0_0 = arith.constant 0 : index
    %0 = vector.load %arg1[%c0, %c0_0] : memref<2x10xf32, #tpu.memory_space<vmem>>, vector<2x10xf32>
    %c0_1 = arith.constant 0 : index
    %c0_2 = arith.constant 0 : index
    %1 = vector.load %arg2[%c0_1, %c0_2] : memref<10x25xf32, #tpu.memory_space<vmem>>, vector<10x25xf32>
    %cst = arith.constant dense<0.000000e+00> : vector<2x25xf32>
    %2 = tpu.matmul %0, %1, %cst {dimension_numbers = #tpu.dot_dimension_numbers<[1], [0], [0], [1], [0, 0, 1, 1], [], []>} : vector<2x10xf32>, vector<10x25xf32>, vector<2x25xf32> -> vector<2x25xf32>
    %c0_3 = arith.constant 0 : index
    %c0_4 = arith.constant 0 : index
    %3 = vector.load %arg3[%c0_3, %c0_4] : memref<1x25xf32, #tpu.memory_space<vmem>>, vector<1x25xf32>
    %4 = vector.broadcast %3 : vector<1x25xf32> to vector<2x25xf32>
    %5 = arith.addf %2, %4 : vector<2x25xf32>
    %6 = math.tanh %5 : vector<2x25xf32>
    %c0_5 = arith.constant 0 : index
    %c0_6 = arith.constant 0 : index
    %7 = vector.load %arg4[%c0_5, %c0_6] : memref<25x32xf32, #tpu.memory_space<vmem>>, vector<25x32xf32>
    %cst_7 = arith.constant dense<0.000000e+00> : vector<2x32xf32>
    %8 = tpu.matmul %6, %7, %cst_7 {dimension_numbers = #tpu.dot_dimension_numbers<[1], [0], [0], [1], [0, 0, 1, 1], [], []>} : vector<2x25xf32>, vector<25x32xf32>, vector<2x32xf32> -> vector<2x32xf32>
    %c0_8 = arith.constant 0 : index
    %c0_9 = arith.constant 0 : index
    %9 = vector.load %arg5[%c0_8, %c0_9] : memref<1x32xf32, #tpu.memory_space<vmem>>, vector<1x32xf32>
    %10 = vector.broadcast %9 : vector<1x32xf32> to vector<2x32xf32>
    %11 = arith.addf %8, %10 : vector<2x32xf32>
    %c0_10 = arith.constant 0 : index
    %c0_11 = arith.constant 0 : index
    %12 = vector.load %arg6[%c0_10, %c0_11] : memref<25x8xf32, #tpu.memory_space<vmem>>, vector<25x8xf32>
    %cst_12 = arith.constant dense<0.000000e+00> : vector<2x8xf32>
    %13 = tpu.matmul %6, %12, %cst_12 {dimension_numbers = #tpu.dot_dimension_numbers<[1], [0], [0], [1], [0, 0, 1, 1], [], []>} : vector<2x25xf32>, vector<25x8xf32>, vector<2x8xf32> -> vector<2x8xf32>
    %c0_13 = arith.constant 0 : index
    %c0_14 = arith.constant 0 : index
    %14 = vector.load %arg7[%c0_13, %c0_14] : memref<1x8xf32, #tpu.memory_space<vmem>>, vector<1x8xf32>
    %15 = vector.broadcast %14 : vector<1x8xf32> to vector<2x8xf32>
    %16 = arith.addf %13, %15 : vector<2x8xf32>
    %c0_15 = arith.constant 0 : index
    %17 = memref.load %arg0[%c0_15] : memref<2xf32, #tpu.memory_space<smem>>
    %18 = vector.broadcast %17 : f32 to vector<1x1xf32>
    %cst_16 = arith.constant 0.000000e+00 : f32
    %19 = vector.broadcast %cst_16 : f32 to vector<1x1xf32>
    %20 = arith.maximumf %18, %19 : vector<1x1xf32>
    %21 = math.absf %18 : vector<1x1xf32>
    %cst_17 = arith.constant 0.000000e+00 : f32
    %22 = vector.broadcast %cst_17 : f32 to vector<1x1xf32>
    %23 = arith.subf %22, %21 : vector<1x1xf32>
    %24 = math.exp %23 : vector<1x1xf32>
    %cst_18 = arith.constant 1.000000e+00 : f32
    %25 = vector.broadcast %cst_18 : f32 to vector<1x1xf32>
    %26 = arith.addf %25, %24 : vector<1x1xf32>
    %27 = math.log %26 : vector<1x1xf32>
    %28 = arith.addf %20, %27 : vector<1x1xf32>
    %c1 = arith.constant 1 : index
    %29 = memref.load %arg0[%c1] : memref<2xf32, #tpu.memory_space<smem>>
    %30 = vector.broadcast %29 : f32 to vector<1x1xf32>
    %cst_19 = arith.constant 0.000000e+00 : f32
    %31 = vector.broadcast %cst_19 : f32 to vector<1x1xf32>
    %32 = arith.maximumf %30, %31 : vector<1x1xf32>
    %33 = math.absf %30 : vector<1x1xf32>
    %cst_20 = arith.constant 0.000000e+00 : f32
    %34 = vector.broadcast %cst_20 : f32 to vector<1x1xf32>
    %35 = arith.subf %34, %33 : vector<1x1xf32>
    %36 = math.exp %35 : vector<1x1xf32>
    %cst_21 = arith.constant 1.000000e+00 : f32
    %37 = vector.broadcast %cst_21 : f32 to vector<1x1xf32>
    %38 = arith.addf %37, %36 : vector<1x1xf32>
    %39 = math.log %38 : vector<1x1xf32>
    %40 = arith.addf %32, %39 : vector<1x1xf32>
    %c0_22 = arith.constant 0 : index
    %c0_23 = arith.constant 0 : index
    %41 = vector.load %arg8[%c0_22, %c0_23] : memref<2x32xf32, #tpu.memory_space<vmem>>, vector<2x32xf32>
    %42 = vector.broadcast %28 : vector<1x1xf32> to vector<2x32xf32>
    %43 = arith.mulf %42, %41 : vector<2x32xf32>
    %44 = arith.addf %11, %43 : vector<2x32xf32>
    %c0_24 = arith.constant 0 : index
    %c0_25 = arith.constant 0 : index
    %45 = vector.load %arg10[%c0_24, %c0_25] : memref<2x32xf32, #tpu.memory_space<vmem>>, vector<2x32xf32>
    tpu.vector_store %arg10[%c0_24, %c0_25], %44 {strides = array<i32>} : memref<2x32xf32, #tpu.memory_space<vmem>>, vector<2x32xf32>,
    %c0_26 = arith.constant 0 : index
    %c0_27 = arith.constant 0 : index
    %46 = vector.load %arg9[%c0_26, %c0_27] : memref<2x8xf32, #tpu.memory_space<vmem>>, vector<2x8xf32>
    %47 = vector.broadcast %40 : vector<1x1xf32> to vector<2x8xf32>
    %48 = arith.mulf %47, %46 : vector<2x8xf32>
    %49 = arith.addf %16, %48 : vector<2x8xf32>
    %c0_28 = arith.constant 0 : index
    %c0_29 = arith.constant 0 : index
    %50 = vector.load %arg11[%c0_28, %c0_29] : memref<2x8xf32, #tpu.memory_space<vmem>>, vector<2x8xf32>
    tpu.vector_store %arg11[%c0_28, %c0_29], %49 {strides = array<i32>} : memref<2x8xf32, #tpu.memory_space<vmem>>, vector<2x8xf32>,
    %cst_30 = arith.constant 1.000000e+00 : f32
    %51 = vector.broadcast %cst_30 : f32 to vector<1x1xf32>
    %52 = arith.divf %28, %51 : vector<1x1xf32>
    %53 = math.log %52 : vector<1x1xf32>
    %54 = arith.mulf %11, %11 : vector<2x32xf32>
    %cst_31 = arith.constant 1.000000e+00 : f32
    %55 = vector.broadcast %cst_31 : f32 to vector<2x32xf32>
    %56 = arith.addf %55, %54 : vector<2x32xf32>
    %cst_32 = arith.constant 2.000000e+00 : f32
    %57 = vector.broadcast %cst_32 : f32 to vector<1x1xf32>
    %58 = arith.mulf %57, %28 : vector<1x1xf32>
    %59 = arith.mulf %58, %28 : vector<1x1xf32>
    %60 = vector.broadcast %59 : vector<1x1xf32> to vector<2x32xf32>
    %61 = arith.divf %56, %60 : vector<2x32xf32>
    %62 = vector.broadcast %53 : vector<1x1xf32> to vector<2x32xf32>
    %63 = arith.addf %62, %61 : vector<2x32xf32>
    %cst_33 = arith.constant 5.000000e-01 : f32
    %64 = vector.broadcast %cst_33 : f32 to vector<2x32xf32>
    %65 = arith.subf %63, %64 : vector<2x32xf32>
    %66 = vector.shape_cast %65 : vector<2x32xf32> to vector<1x2x32xf32>
    %cst_34 = arith.constant dense<0.000000e+00> : vector<1xf32>
    %67 = vector.multi_reduction <add>, %66, %cst_34 [1, 2] : vector<1x2x32xf32> to vector<1xf32>
    %68 = vector.shape_cast %67 : vector<1xf32> to vector<1x1x1xf32>
    %69 = vector.extract %68[0, 0, 0] : f32 from vector<1x1x1xf32>
    %70 = vector.broadcast %69 : f32 to vector<1x1xf32>
    %cst_35 = arith.constant 1.600000e+01 : f32
    %71 = vector.broadcast %cst_35 : f32 to vector<1x1xf32>
    %72 = arith.divf %70, %71 : vector<1x1xf32>
    %c0_36 = arith.constant 0 : index
    %c0_37 = arith.constant 0 : index
    %73 = vector.load %arg12[%c0_36, %c0_37] : memref<1x1xf32, #tpu.memory_space<vmem>>, vector<1x1xf32>
    tpu.vector_store %arg12[%c0_36, %c0_37], %72 {strides = array<i32>} : memref<1x1xf32, #tpu.memory_space<vmem>>, vector<1x1xf32>,
    return
  }
}

</mosaic_0001>

<llo_original>
// kernel: tpu_custom_call.1
$region0: #{tpu_custom_call.1}
  #allocation0 [shape = 'u32[]', space=smem, size = 0x4, offset = 0x4, fixed_abs, tag = 'smem constant byte address 0x4 - core index']
  #allocation1 [shape = 'u32[144,128]{1,0:T(1,128)}', space=vmem, size = 0x12000, scoped, tag = 'internal scratch']
  %s0 = inlined_call_operand.hbm [shape: f32[2], index: 0, kind: input, shape index: {}]
  %s1 = inlined_call_operand.vmem [shape: f32[2,10], index: 1, kind: input, shape index: {}]
  %s2 = inlined_call_operand.vmem [shape: f32[10,25], index: 2, kind: input, shape index: {}]
  %s3 = inlined_call_operand.hbm [shape: f32[1,25], index: 3, kind: input, shape index: {}]
  %s4 = inlined_call_operand.vmem [shape: f32[25,32], index: 4, kind: input, shape index: {}]
  %s5 = inlined_call_operand.hbm [shape: f32[1,32], index: 5, kind: input, shape index: {}]
  %s6 = inlined_call_operand.vmem [shape: f32[25,8], index: 6, kind: input, shape index: {}]
  %s7 = inlined_call_operand.vmem [shape: f32[1,8], index: 7, kind: input, shape index: {}]
  %s8 = inlined_call_operand.vmem [shape: f32[2,32], index: 8, kind: input, shape index: {}]
  %s9 = inlined_call_operand.vmem [shape: f32[2,8], index: 9, kind: input, shape index: {}]
  %s10 = inlined_call_operand.hbm [shape: f32[2,32], index: 10, kind: output, shape index: {0}]
  %s11 = inlined_call_operand.hbm [shape: f32[2,8], index: 11, kind: output, shape index: {1}]
  %s12 = inlined_call_operand.hbm [shape: f32[1,1], index: 12, kind: output, shape index: {2}]
  %13 = xla_tuple %s10, %s11, %s12
  %s14 = sld [smem:[#allocation0]]
  $region78: #{tpu_custom_call.1} parent=0
    _
  %s16 = ssub.s32 1, %s14
  %s17 = scalar_select 0, %s16, %s14
  $region1: #{tpu_custom_call.1} parent=0
    #allocation2 [shape = 'u8[512]{0}', space=smem, size = 0x200, scoped, tag = 'input window, operand 0, single buffered']
    #allocation3 [shape = 's32[1]{0}', space=sflag, size = 0x4, scoped, tag = 'scoped memory for tpu_custom_call.1']
    #allocation4 [shape = 's32[1]{0}', space=sflag, size = 0x4, scoped, tag = 'scoped memory for tpu_custom_call.1']
    #allocation5 [shape = 's32[1]{0}', space=sflag, size = 0x4, scoped, tag = 'scoped memory for tpu_custom_call.1']
    #allocation6 [shape = 'u8[512]{0}', space=vmem, size = 0x400, scoped, tag = 'input window, operand 3, single buffered']
    #allocation7 [shape = 'u8[512]{0}', space=vmem, size = 0x400, scoped, tag = 'input window, operand 5, single buffered']
    #allocation8 [shape = 's32[1]{0}', space=sflag, size = 0x4, scoped, tag = 'scoped memory for tpu_custom_call.1']
    #allocation9 [shape = 'u8[1024]{0}', space=vmem, size = 0x400, scoped, tag = 'output window, operand 0, single buffered']
    #allocation10 [shape = 'u8[1024]{0}', space=vmem, size = 0x400, scoped, tag = 'output window, operand 1, single buffered']
    #allocation11 [shape = 's32[1]{0}', space=sflag, size = 0x4, scoped, tag = 'scoped memory for tpu_custom_call.1']
    #allocation12 [shape = 'u8[512]{0}', space=vmem, size = 0x400, scoped, tag = 'output window, operand 2, single buffered']
    %18 = vsyncpa [#allocation5], 0
    %19 = vsyncpa [#allocation3], 0
    %20 = vsyncpa [#allocation8], 0
    %21 = vsyncpa [#allocation4], 0
    %22 = vsyncpa [#allocation11], 0
    // Predicated region
    $region2: #{tpu_custom_call.1} parent=1 // pred_check
      _
    $region3: #{tpu_custom_call.1} parent=1 // pred_check_branch
      %24 = sbr.rel (0) target = $region5
    $region4: #{tpu_custom_call.1} parent=1 // pred_region
      %s26 = ssub.s32 16, 16
      %27 = vsyncadd [#allocation5], %s26
      %30 = dma.hbm_to_smem %s0, 16, [#allocation2], [#allocation5]
    $region5: #{tpu_custom_call.1} parent=1 // pred_fallthru
      _
    // Predicated region
    $region6: #{tpu_custom_call.1} parent=1 // pred_check
      _
    $region7: #{tpu_custom_call.1} parent=1 // pred_check_branch
      %32 = sbr.rel (0) target = $region9
    $region8: #{tpu_custom_call.1} parent=1 // pred_region
      _
    $region9: #{tpu_custom_call.1} parent=1 // pred_fallthru
      _
    // Predicated region
    $region10: #{tpu_custom_call.1} parent=1 // pred_check
      _
    $region11: #{tpu_custom_call.1} parent=1 // pred_check_branch
      %34 = sbr.rel (0) target = $region13
    $region12: #{tpu_custom_call.1} parent=1 // pred_region
      _
    $region13: #{tpu_custom_call.1} parent=1 // pred_fallthru
      _
    // Predicated region
    $region14: #{tpu_custom_call.1} parent=1 // pred_check
      _
    $region15: #{tpu_custom_call.1} parent=1 // pred_check_branch
      %36 = sbr.rel (0) target = $region17
    $region16: #{tpu_custom_call.1} parent=1 // pred_region
      %s38 = ssub.s32 16, 16
      %39 = vsyncadd [#allocation3], %s38
      %s41 = sshll.u32 [#allocation6], 4
      %s42 = int_to_ptr.vmem [resolvable:$true] %s41
      %44 = dma.hbm_to_vmem [thread:$0]  %s3, 16, %s42, [#allocation3]
    $region17: #{tpu_custom_call.1} parent=1 // pred_fallthru
      _
    // Predicated region
    $region18: #{tpu_custom_call.1} parent=1 // pred_check
      _
    $region19: #{tpu_custom_call.1} parent=1 // pred_check_branch
      %46 = sbr.rel (0) target = $region21
    $region20: #{tpu_custom_call.1} parent=1 // pred_region
      _
    $region21: #{tpu_custom_call.1} parent=1 // pred_fallthru
      _
    // Predicated region
    $region22: #{tpu_custom_call.1} parent=1 // pred_check
      _
    $region23: #{tpu_custom_call.1} parent=1 // pred_check_branch
      %48 = sbr.rel (0) target = $region25
    $region24: #{tpu_custom_call.1} parent=1 // pred_region
      %s50 = ssub.s32 16, 16
      %51 = vsyncadd [#allocation8], %s50
      %s53 = sshll.u32 [#allocation7], 4
      %s54 = int_to_ptr.vmem [resolvable:$true] %s53
      %56 = dma.hbm_to_vmem [thread:$0]  %s5, 16, %s54, [#allocation8]
    $region25: #{tpu_custom_call.1} parent=1 // pred_fallthru
      _
    // Predicated region
    $region26: #{tpu_custom_call.1} parent=1 // pred_check
      _
    $region27: #{tpu_custom_call.1} parent=1 // pred_check_branch
      %58 = sbr.rel (0) target = $region29
    $region28: #{tpu_custom_call.1} parent=1 // pred_region
      _
    $region29: #{tpu_custom_call.1} parent=1 // pred_fallthru
      _
    // Predicated region
    $region30: #{tpu_custom_call.1} parent=1 // pred_check
      _
    $region31: #{tpu_custom_call.1} parent=1 // pred_check_branch
      %60 = sbr.rel (0) target = $region33
    $region32: #{tpu_custom_call.1} parent=1 // pred_region
      _
    $region33: #{tpu_custom_call.1} parent=1 // pred_fallthru
      _
    // Predicated region
    $region34: #{tpu_custom_call.1} parent=1 // pred_check
      _
    $region35: #{tpu_custom_call.1} parent=1 // pred_check_branch
      %62 = sbr.rel (0) target = $region37
    $region36: #{tpu_custom_call.1} parent=1 // pred_region
      _
    $region37: #{tpu_custom_call.1} parent=1 // pred_fallthru
      _
    // Predicated region
    $region38: #{tpu_custom_call.1} parent=1 // pred_check
      _
    $region39: #{tpu_custom_call.1} parent=1 // pred_check_branch
      %64 = sbr.rel (0) target = $region41
    $region40: #{tpu_custom_call.1} parent=1 // pred_region
      _
    $region41: #{tpu_custom_call.1} parent=1 // pred_fallthru
      _
    // Predicated region
    $region42: #{tpu_custom_call.1} parent=1 // pred_check
      _
    $region43: #{tpu_custom_call.1} parent=1 // pred_check_branch
      %66 = sbr.rel (0) target = $region45
    $region44: #{tpu_custom_call.1} parent=1 // pred_region
      %67 = dma.done [#allocation5], 16
    $region45: #{tpu_custom_call.1} parent=1 // pred_fallthru
      _
    // Predicated region
    $region46: #{tpu_custom_call.1} parent=1 // pred_check
      _
    $region47: #{tpu_custom_call.1} parent=1 // pred_check_branch
      %69 = sbr.rel (0) target = $region49
    $region48: #{tpu_custom_call.1} parent=1 // pred_region
      %70 = dma.done [#allocation3], 16
    $region49: #{tpu_custom_call.1} parent=1 // pred_fallthru
      _
    // Predicated region
    $region50: #{tpu_custom_call.1} parent=1 // pred_check
      _
    $region51: #{tpu_custom_call.1} parent=1 // pred_check_branch
      %72 = sbr.rel (0) target = $region53
    $region52: #{tpu_custom_call.1} parent=1 // pred_region
      %73 = dma.done [#allocation8], 16
    $region53: #{tpu_custom_call.1} parent=1 // pred_fallthru
      _
    %74 = sfence
    %v75 = vld [vmem:[%s1] sm:$0x3]
    %v76 = vld [vmem:[%s2] sm:$0xff]
    %v77 = vld [vmem:[%s2 + $0x8] sm:$0x3]
    %v78 = vld [vmem:[#allocation6] sm:$0x1]
    %v80 = vlaneseq
    %v81 = vshrl.u32 %v80, 7
    %v82 = vsub.s32 0, %v81
    %v83 = vrot.slane %v78, %v82
    %vm85 = vcmask 80896
    %v87 = vsel %vm85, %v75, 0
    %vm89 = vcmask 1041408
    %v91 = vsel %vm89, %v77, 0
    %93 = vmatprep.subr.mxu0 0.0
    %94 = vmatpush1.msra.mxu0 %v76
    %95 = vmatprep.subr.mxu0 0.0
    %96 = vmatpush1.msra.mxu0 %v91
    %97 = vmatprep.subr.mxu0 0.0
    %98 = vmatpush1.msra.mxu0 0.0
    %99 = vmatprep.subr.mxu0 0.0
    %100 = vmatpush1.msra.mxu0 0.0
    %101 = vmatprep.subr.mxu0 0.0
    %102 = vmatpush1.msra.mxu0 0.0
    %103 = vmatprep.subr.mxu0 0.0
    %104 = vmatpush1.msra.mxu0 0.0
    %105 = vmatprep.subr.mxu0 0.0
    %106 = vmatpush1.msra.mxu0 0.0
    %107 = vmatprep.subr.mxu0 0.0
    %108 = vmatpush1.msra.mxu0 0.0
    %109 = vmatprep.subr.mxu0 0.0
    %110 = vmatpush1.msra.mxu0 0.0
    %111 = vmatprep.subr.mxu0 0.0
    %112 = vmatpush1.msra.mxu0 0.0
    %113 = vmatprep.subr.mxu0 0.0
    %114 = vmatpush1.msra.mxu0 0.0
    %115 = vmatprep.subr.mxu0 0.0
    %116 = vmatpush1.msra.mxu0 0.0
    %117 = vmatprep.subr.mxu0 0.0
    %118 = vmatpush1.msra.mxu0 0.0
    %119 = vmatprep.subr.mxu0 0.0
    %120 = vmatpush1.msra.mxu0 0.0
    %121 = vmatprep.subr.mxu0 0.0
    %122 = vmatpush1.msra.mxu0 0.0
    %123 = vmatprep.subr.mxu0 0.0
    %124 = vmatpush1.msra.mxu0 0.0
    %125 = vmatprep.subr.mxu0 0.0
    %126 = vmatpush1.msra.mxu0 0.0
    %127 = vmatprep.subr.mxu0 0.0
    %128 = vmatpush1.msra.mxu0 0.0
    %129 = vmatprep.subr.mxu0 0.0
    %130 = vmatpush1.msra.mxu0 0.0
    %131 = vmatprep.subr.mxu0 0.0
    %132 = vmatpush1.msra.mxu0 0.0
    %133 = vmatprep.subr.mxu0 0.0
    %134 = vmatpush1.msra.mxu0 0.0
    %135 = vmatprep.subr.mxu0 0.0
    %136 = vmatpush1.msra.mxu0 0.0
    %137 = vmatprep.subr.mxu0 0.0
    %138 = vmatpush1.msra.mxu0 0.0
    %139 = vmatprep.subr.mxu0 0.0
    %140 = vmatpush1.msra.mxu0 0.0
    %141 = vmatprep.subr.mxu0 0.0
    %142 = vmatpush1.msra.mxu0 0.0
    %143 = vmatprep.subr.mxu0 0.0
    %144 = vmatpush1.msra.mxu0 0.0
    %145 = vmatprep.subr.mxu0 0.0
    %146 = vmatpush1.msra.mxu0 0.0
    %147 = vmatprep.subr.mxu0 0.0
    %148 = vmatpush1.msra.mxu0 0.0
    %149 = vmatprep.subr.mxu0 0.0
    %150 = vmatpush1.msra.mxu0 0.0
    %151 = vmatprep.subr.mxu0 0.0
    %152 = vmatpush1.msra.mxu0 0.0
    %153 = vmatprep.subr.mxu0 0.0
    %154 = vmatpush1.msra.mxu0 0.0
    %155 = vmatprep.subr.mxu0 0.0
    %156 = vmatpush1.msra.mxu0 0.0
    %157 = vmatprep.mubr.f32.mxu0 0.0
    %158 = vmatmul.mubr.f32.gmra.mrb[0].mxu0 %v87
    %v159 = vpop.f32.mrb[0].mxu0
    %v160 = vadd.f32 %v83, %v159
    %v161 = vpop.f32.mrb[0].mxu0
    %162 = vdwg.mxu0
    %v163 = vtanh.pop %v160
    %v164 = vld [vmem:[%s4] sm:$0xff]
    %v165 = vld [vmem:[%s4 + $0x8] sm:$0xff]
    %v166 = vld [vmem:[%s4 + $0x10] sm:$0xff]
    %v167 = vld [vmem:[%s4 + $0x18] sm:$0x1]
    %v168 = vld [vmem:[#allocation7] sm:$0x1]
    %v170 = vlaneseq
    %v171 = vshrl.u32 %v170, 7
    %v172 = vsub.s32 0, %v171
    %v173 = vrot.slane %v168, %v172
    %vm175 = vcmask 203776
    %v177 = vsel %vm175, %v163, 0
    %vm179 = vcmask 1040384
    %v181 = vsel %vm179, %v167, 0
    %183 = vmatprep.subr.mxu0 0.0
    %184 = vmatpush1.msra.mxu0 %v164
    %185 = vmatprep.subr.mxu0 0.0
    %186 = vmatpush1.msra.mxu0 %v165
    %187 = vmatprep.subr.mxu0 0.0
    %188 = vmatpush1.msra.mxu0 %v166
    %189 = vmatprep.subr.mxu0 0.0
    %190 = vmatpush1.msra.mxu0 %v181
    %191 = vmatprep.subr.mxu0 0.0
    %192 = vmatpush1.msra.mxu0 0.0
    %193 = vmatprep.subr.mxu0 0.0
    %194 = vmatpush1.msra.mxu0 0.0
    %195 = vmatprep.subr.mxu0 0.0
    %196 = vmatpush1.msra.mxu0 0.0
    %197 = vmatprep.subr.mxu0 0.0
    %198 = vmatpush1.msra.mxu0 0.0
    %199 = vmatprep.subr.mxu0 0.0
    %200 = vmatpush1.msra.mxu0 0.0
    %201 = vmatprep.subr.mxu0 0.0
    %202 = vmatpush1.msra.mxu0 0.0
    %203 = vmatprep.subr.mxu0 0.0
    %204 = vmatpush1.msra.mxu0 0.0
    %205 = vmatprep.subr.mxu0 0.0
    %206 = vmatpush1.msra.mxu0 0.0
    %207 = vmatprep.subr.mxu0 0.0
    %208 = vmatpush1.msra.mxu0 0.0
    %209 = vmatprep.subr.mxu0 0.0
    %210 = vmatpush1.msra.mxu0 0.0
    %211 = vmatprep.subr.mxu0 0.0
    %212 = vmatpush1.msra.mxu0 0.0
    %213 = vmatprep.subr.mxu0 0.0
    %214 = vmatpush1.msra.mxu0 0.0
    %215 = vmatprep.subr.mxu0 0.0
    %216 = vmatpush1.msra.mxu0 0.0
    %217 = vmatprep.subr.mxu0 0.0
    %218 = vmatpush1.msra.mxu0 0.0
    %219 = vmatprep.subr.mxu0 0.0
    %220 = vmatpush1.msra.mxu0 0.0
    %221 = vmatprep.subr.mxu0 0.0
    %222 = vmatpush1.msra.mxu0 0.0
    %223 = vmatprep.subr.mxu0 0.0
    %224 = vmatpush1.msra.mxu0 0.0
    %225 = vmatprep.subr.mxu0 0.0
    %226 = vmatpush1.msra.mxu0 0.0
    %227 = vmatprep.subr.mxu0 0.0
    %228 = vmatpush1.msra.mxu0 0.0
    %229 = vmatprep.subr.mxu0 0.0
    %230 = vmatpush1.msra.mxu0 0.0
    %231 = vmatprep.subr.mxu0 0.0
    %232 = vmatpush1.msra.mxu0 0.0
    %233 = vmatprep.subr.mxu0 0.0
    %234 = vmatpush1.msra.mxu0 0.0
    %235 = vmatprep.subr.mxu0 0.0
    %236 = vmatpush1.msra.mxu0 0.0
    %237 = vmatprep.subr.mxu0 0.0
    %238 = vmatpush1.msra.mxu0 0.0
    %239 = vmatprep.subr.mxu0 0.0
    %240 = vmatpush1.msra.mxu0 0.0
    %241 = vmatprep.subr.mxu0 0.0
    %242 = vmatpush1.msra.mxu0 0.0
    %243 = vmatprep.subr.mxu0 0.0
    %244 = vmatpush1.msra.mxu0 0.0
    %245 = vmatprep.subr.mxu0 0.0
    %246 = vmatpush1.msra.mxu0 0.0
    %247 = vmatprep.mubr.f32.mxu0 0.0
    %248 = vmatmul.mubr.f32.gmra.mrb[0].mxu0 %v177
    %v249 = vpop.f32.mrb[0].mxu0
    %v250 = vadd.f32 %v173, %v249
    %v251 = vpop.f32.mrb[0].mxu0
    %252 = vdwg.mxu0
    %v253 = vld [vmem:[%s6] sm:$0xff]
    %v254 = vld [vmem:[%s6 + $0x8] sm:$0xff]
    %v255 = vld [vmem:[%s6 + $0x10] sm:$0xff]
    %v256 = vld [vmem:[%s6 + $0x18] sm:$0x1]
    %v257 = vld [vmem:[%s7] sm:$0x1]
    %v259 = vlaneseq
    %v260 = vshrl.u32 %v259, 7
    %v261 = vsub.s32 0, %v260
    %v262 = vrot.slane %v257, %v261
    %v265 = vsel %vm179, %v256, 0
    %267 = vmatprep.subr.mxu0 0.0
    %268 = vmatpush1.msra.mxu0 %v253
    %269 = vmatprep.subr.mxu0 0.0
    %270 = vmatpush1.msra.mxu0 %v254
    %271 = vmatprep.subr.mxu0 0.0
    %272 = vmatpush1.msra.mxu0 %v255
    %273 = vmatprep.subr.mxu0 0.0
    %274 = vmatpush1.msra.mxu0 %v265
    %275 = vmatprep.subr.mxu0 0.0
    %276 = vmatpush1.msra.mxu0 0.0
    %277 = vmatprep.subr.mxu0 0.0
    %278 = vmatpush1.msra.mxu0 0.0
    %279 = vmatprep.subr.mxu0 0.0
    %280 = vmatpush1.msra.mxu0 0.0
    %281 = vmatprep.subr.mxu0 0.0
    %282 = vmatpush1.msra.mxu0 0.0
    %283 = vmatprep.subr.mxu0 0.0
    %284 = vmatpush1.msra.mxu0 0.0
    %285 = vmatprep.subr.mxu0 0.0
    %286 = vmatpush1.msra.mxu0 0.0
    %287 = vmatprep.subr.mxu0 0.0
    %288 = vmatpush1.msra.mxu0 0.0
    %289 = vmatprep.subr.mxu0 0.0
    %290 = vmatpush1.msra.mxu0 0.0
    %291 = vmatprep.subr.mxu0 0.0
    %292 = vmatpush1.msra.mxu0 0.0
    %293 = vmatprep.subr.mxu0 0.0
    %294 = vmatpush1.msra.mxu0 0.0
    %295 = vmatprep.subr.mxu0 0.0
    %296 = vmatpush1.msra.mxu0 0.0
    %297 = vmatprep.subr.mxu0 0.0
    %298 = vmatpush1.msra.mxu0 0.0
    %299 = vmatprep.subr.mxu0 0.0
    %300 = vmatpush1.msra.mxu0 0.0
    %301 = vmatprep.subr.mxu0 0.0
    %302 = vmatpush1.msra.mxu0 0.0
    %303 = vmatprep.subr.mxu0 0.0
    %304 = vmatpush1.msra.mxu0 0.0
    %305 = vmatprep.subr.mxu0 0.0
    %306 = vmatpush1.msra.mxu0 0.0
    %307 = vmatprep.subr.mxu0 0.0
    %308 = vmatpush1.msra.mxu0 0.0
    %309 = vmatprep.subr.mxu0 0.0
    %310 = vmatpush1.msra.mxu0 0.0
    %311 = vmatprep.subr.mxu0 0.0
    %312 = vmatpush1.msra.mxu0 0.0
    %313 = vmatprep.subr.mxu0 0.0
    %314 = vmatpush1.msra.mxu0 0.0
    %315 = vmatprep.subr.mxu0 0.0
    %316 = vmatpush1.msra.mxu0 0.0
    %317 = vmatprep.subr.mxu0 0.0
    %318 = vmatpush1.msra.mxu0 0.0
    %319 = vmatprep.subr.mxu0 0.0
    %320 = vmatpush1.msra.mxu0 0.0
    %321 = vmatprep.subr.mxu0 0.0
    %322 = vmatpush1.msra.mxu0 0.0
    %323 = vmatprep.subr.mxu0 0.0
    %324 = vmatpush1.msra.mxu0 0.0
    %325 = vmatprep.subr.mxu0 0.0
    %326 = vmatpush1.msra.mxu0 0.0
    %327 = vmatprep.subr.mxu0 0.0
    %328 = vmatpush1.msra.mxu0 0.0
    %329 = vmatprep.subr.mxu0 0.0
    %330 = vmatpush1.msra.mxu0 0.0
    %331 = vmatprep.mubr.f32.mxu0 0.0
    %332 = vmatmul.mubr.f32.gmra.mrb[0].mxu0 %v177
    %v333 = vpop.f32.mrb[0].mxu0
    %v334 = vadd.f32 %v262, %v333
    %v335 = vpop.f32.mrb[0].mxu0
    %336 = vdwg.mxu0
    %s337 = sld [smem:[#allocation2]]
    %v338 = vstv %s337
    %v339 = vmax.f32 %v338, 0.0
    %v340 = vand.u32 2147483647, %v338
    %v341 = vsub.f32 0.0, %v340
    %v342 = vmul.f32 %v341, 1.442695
    %v343 = vpow.pop %v342
    %v344 = vadd.f32 %v343, 1.0
    %v345 = vlog2.pop %v344
    %v346 = vmul.f32 %v345, 0.6931472
    %v347 = vadd.f32 %v339, %v346
    %s348 = sld [smem:[#allocation2 + $0x1]]
    %v349 = vstv %s348
    %v350 = vmax.f32 %v349, 0.0
    %v351 = vand.u32 2147483647, %v349
    %v352 = vsub.f32 0.0, %v351
    %v353 = vmul.f32 %v352, 1.442695
    %v354 = vpow.pop %v353
    %v355 = vadd.f32 %v354, 1.0
    %v356 = vlog2.pop %v355
    %v357 = vmul.f32 %v356, 0.6931472
    %v358 = vadd.f32 %v350, %v357
    %v359 = vld [vmem:[%s8] sm:$0x3]
    %v360 = vmul.f32 %v347, %v359
    %v361 = vadd.f32 %v250, %v360
    %vm362 = vcmask 254976
    %363 = vst.msk [vmem:[#allocation9] sm:$0x3] %vm362, %v361
    %v364 = vld [vmem:[%s9] sm:$0x3]
    %v365 = vmul.f32 %v358, %v364
    %v366 = vadd.f32 %v334, %v365
    %vm367 = vcmask 58368
    %368 = vst.msk [vmem:[#allocation10] sm:$0x3] %vm367, %v366
    %v369 = vlog2.pop %v347
    %v370 = vmul.f32 %v369, 0.6931472
    %v371 = vmul.f32 %v250, %v250
    %v372 = vadd.f32 %v371, 1.0
    %v373 = vmul.f32 %v347, 2.0
    %v374 = vmul.f32 %v373, %v347
    %v375 = vrcp.pop %v374
    %v376 = vmul.f32 %v372, %v375
    %v377 = vadd.f32 %v370, %v376
    %v378 = vsub.f32 %v377, 0.5
    %v379 = vsel %vm362, %v378, 0.0
    %380 = vadd.xlane.f32.xlu0 %v379
    %v381 = vpop.xlane.xlu0 %380
    %v382 = vrot.slane %v381, 4
    %v383 = vadd.f32 %v381, %v382
    %v384 = vrot.slane %v383, 2
    %v385 = vadd.f32 %v383, %v384
    %v386 = vrot.slane %v385, 1
    %v387 = vadd.f32 %v385, %v386
    %s388 = vtos %v387
    %v389 = vstv %s388
    %v390 = vrcp.pop 16.0
    %v391 = vmul.f32 %v389, %v390
    %vm392 = vcmask 0
    %393 = vst.msk [vmem:[#allocation12] sm:$0x1] %vm392, %v391
    // Predicated region
    $region54: #{tpu_custom_call.1} parent=1 // pred_check
      _
    $region55: #{tpu_custom_call.1} parent=1 // pred_check_branch
      %395 = sbr.rel (0) target = $region57
    $region56: #{tpu_custom_call.1} parent=1 // pred_region
      %s397 = ssub.s32 32, 32
      %398 = vsyncadd [#allocation4], %s397
      %s400 = sshll.u32 [#allocation9], 4
      %s401 = int_to_ptr.vmem [resolvable:$true] %s400
      %403 = dma.vmem_to_hbm [thread:$0]  %s401, 32, %s10, [#allocation4]
    $region57: #{tpu_custom_call.1} parent=1 // pred_fallthru
      _
    // Predicated region
    $region58: #{tpu_custom_call.1} parent=1 // pred_check
      _
    $region59: #{tpu_custom_call.1} parent=1 // pred_check_branch
      %405 = sbr.rel (0) target = $region61
    $region60: #{tpu_custom_call.1} parent=1 // pred_region
      %s407 = ssub.s32 32, 32
      %408 = vsyncadd [#allocation11], %s407
      %s410 = sshll.u32 [#allocation10], 4
      %s411 = int_to_ptr.vmem [resolvable:$true] %s410
      %413 = dma.vmem_to_hbm [thread:$0]  %s411, 32, %s11, [#allocation11]
    $region61: #{tpu_custom_call.1} parent=1 // pred_fallthru
      _
    // Predicated region
    $region62: #{tpu_custom_call.1} parent=1 // pred_check
      _
    $region63: #{tpu_custom_call.1} parent=1 // pred_check_branch
      %415 = sbr.rel (0) target = $region65
    $region64: #{tpu_custom_call.1} parent=1 // pred_region
      %s417 = ssub.s32 16, 16
      %418 = vsyncadd [#allocation11], %s417
      %s420 = sshll.u32 [#allocation12], 4
      %s421 = int_to_ptr.vmem [resolvable:$true] %s420
      %423 = dma.vmem_to_hbm [thread:$0]  %s421, 16, %s12, [#allocation11]
    $region65: #{tpu_custom_call.1} parent=1 // pred_fallthru
      _
    // Predicated region
    $region66: #{tpu_custom_call.1} parent=1 // pred_check
      _
    $region67: #{tpu_custom_call.1} parent=1 // pred_check_branch
      %425 = sbr.rel (0) target = $region69
    $region68: #{tpu_custom_call.1} parent=1 // pred_region
      %426 = dma.done [#allocation4], 32
    $region69: #{tpu_custom_call.1} parent=1 // pred_fallthru
      _
    // Predicated region
    $region70: #{tpu_custom_call.1} parent=1 // pred_check
      _
    $region71: #{tpu_custom_call.1} parent=1 // pred_check_branch
      %428 = sbr.rel (0) target = $region73
    $region72: #{tpu_custom_call.1} parent=1 // pred_region
      %429 = dma.done [#allocation11], 32
    $region73: #{tpu_custom_call.1} parent=1 // pred_fallthru
      _
    // Predicated region
    $region74: #{tpu_custom_call.1} parent=1 // pred_check
      _
    $region75: #{tpu_custom_call.1} parent=1 // pred_check_branch
      %431 = sbr.rel (0) target = $region77
    $region76: #{tpu_custom_call.1} parent=1 // pred_region
      %432 = dma.done [#allocation11], 16
    $region77: #{tpu_custom_call.1} parent=1 // pred_fallthru
      _
    %433 = vsyncpa [#allocation3], 1
    %434 = vsyncpa [#allocation8], 1
    %435 = vsyncpa [#allocation4], 1
    %436 = vsyncpa [#allocation11], 1
    %437 = vsyncpa [#allocation5], 1

</llo_original>
